<compile_context>
chip_gen: v5e
topology: v5e:2x2
jax: 0.10.0
libtpu: 0.0.40
codegen_flags: <defaults>
</compile_context>

<pallas_src>
import jax
import jax.numpy as jnp
from jax.experimental import pallas as pl
from jax.experimental.pallas import tpu as pltpu


def mlp_kernel(x_ref, w1_ref, b1_ref, w2_ref, b2_ref, o_ref):
    # fc1 + bias + ReLU (all f32, f32 MXU accumulation)
    h = jnp.dot(x_ref[...], w1_ref[...], preferred_element_type=jnp.float32)
    h = jnp.maximum(h + b1_ref[...], 0.0)
    # fc2 + bias (f32)
    z = jnp.dot(h, w2_ref[...], preferred_element_type=jnp.float32) + b2_ref[...]
    # log_softmax over dim=1 (last / lane axis), numerically stable
    m = jnp.max(z, axis=-1, keepdims=True)
    s = z - m
    lse = jnp.log(jnp.sum(jnp.exp(s), axis=-1, keepdims=True))
    o_ref[...] = (s - lse).astype(o_ref.dtype)


def _round_up(v, m):
    return ((v + m - 1) // m) * m


def my_network_forward(x, w1, b1, w2, b2, *, max_tile_b=8192):
    """x: [B, 20]; w1: [10, 20]; b1: [10]; w2: [5, 10]; b2: [5] (PyTorch layout)."""
    B, F_in = x.shape
    H = b1.shape[0]   # 10
    C = b2.shape[0]   # 5

    # Glue (plain JAX, no extra HBM pass for x): [out,in] -> [in,out] weights,
    # [1,out] biases for lane broadcasting. Everything f32.
    w1_t = w1.T.astype(jnp.float32)               # [20, 10]
    w2_t = w2.T.astype(jnp.float32)               # [10, 5]
    b1_r = b1.reshape(1, H).astype(jnp.float32)   # [1, 10]
    b2_r = b2.reshape(1, C).astype(jnp.float32)   # [1, 5]

    # Batch tile: target >= 4 grid steps (megacore sharding on v7x + DMA
    # pipelining) but never below 512 rows/step (per-step overhead) nor above
    # max_tile_b (sized for v7x's 32 MiB scoped VMEM with ~3 KiB/row of
    # lane-padded, double-buffered tiles). Tail blocks are clipped by Pallas;
    # the padded tail rows compute garbage that is discarded on store.
    target_steps, min_tile_b = 4, 512
    tile_b = min(max_tile_b,
                 max(min_tile_b, _round_up(pl.cdiv(B, target_steps), 8)))
    if tile_b >= B:
        tile_b = B        # single block; also handles B not a multiple of 8
    grid = (pl.cdiv(B, tile_b),)

    cost = pl.CostEstimate(
        flops=2 * B * (F_in * H + H * C),
        transcendentals=B * (C + 1),                    # exp per class + log
        bytes_accessed=(B * F_in * 4 + B * C * 4        # x (f32) + out (f32)
                        + (F_in * H + H * C) * 4        # weights (f32)
                        + (H + C) * 4),                 # biases (f32)
    )

    out = pl.pallas_call(
        mlp_kernel,
        out_shape=jax.ShapeDtypeStruct((B, C), jnp.float32),
        grid=grid,
        in_specs=[
            pl.BlockSpec((tile_b, F_in), lambda i: (i, 0)),   # stream x per tile
            pl.BlockSpec((F_in, H), lambda i: (0, 0)),        # weights stay resident
            pl.BlockSpec((1, H), lambda i: (0, 0)),
            pl.BlockSpec((H, C), lambda i: (0, 0)),
            pl.BlockSpec((1, C), lambda i: (0, 0)),
        ],
        out_specs=pl.BlockSpec((tile_b, C), lambda i: (i, 0)),
        compiler_params=pltpu.CompilerParams(
            dimension_semantics=("parallel",),
            vmem_limit_bytes=32 * 1024 * 1024,
        ),
        cost_estimate=cost,
    )(x.astype(jnp.float32), w1_t, b1_r, w2_t, b2_r)
    return out


def init_params(key):
    """Deterministic init mimicking nn.Linear default (uniform +/- 1/sqrt(fan_in))."""
    k1, k2, k3, k4 = jax.random.split(key, 4)
    bound1 = 1.0 / jnp.sqrt(20.0)
    bound2 = 1.0 / jnp.sqrt(10.0)
    w1 = jax.random.uniform(k1, (10, 20), jnp.float32, -bound1, bound1)
    b1 = jax.random.uniform(k2, (10,), jnp.float32, -bound1, bound1)
    w2 = jax.random.uniform(k3, (5, 10), jnp.float32, -bound2, bound2)
    b2 = jax.random.uniform(k4, (5,), jnp.float32, -bound2, bound2)
    return w1, b1, w2, b2


if __name__ == "__main__":
    key = jax.random.PRNGKey(0)
    k_x, k_p = jax.random.split(key)
    B = 8
    x = jax.random.normal(k_x, (B, 20), jnp.float32)
    w1, b1, w2, b2 = init_params(k_p)

    out = my_network_forward(x, w1, b1, w2, b2)
    jax.block_until_ready(out)
    assert out.shape == (B, 5)

    # Pure-f32 PyTorch-semantics reference.
    h_ref = jnp.maximum(x @ w1.T + b1, 0.0)
    z_ref = h_ref @ w2.T + b2
    ref = jax.nn.log_softmax(z_ref, axis=1)
    assert jnp.allclose(out, ref, atol=1e-2, rtol=1e-2), \
        float(jnp.max(jnp.abs(out - ref)))

    print("KERNEL_OK")
</pallas_src>

<mosaic_0001>
module attributes {stable_mosaic.version = 11 : i64} {
  func.func @mlp_kernel(%arg0: i32, %arg1: memref<8x20xf32, #tpu.memory_space<vmem>>, %arg2: memref<20x10xf32, #tpu.memory_space<vmem>>, %arg3: memref<1x10xf32, #tpu.memory_space<vmem>>, %arg4: memref<10x5xf32, #tpu.memory_space<vmem>>, %arg5: memref<1x5xf32, #tpu.memory_space<vmem>>, %arg6: memref<8x5xf32, #tpu.memory_space<vmem>>) attributes {dimension_semantics = [#tpu.dimension_semantics<parallel>], iteration_bounds = array<i64: 1>, scalar_prefetch = 0 : i64, scratch_operands = 0 : i64, tpu.core_type = #tpu.core_type<tc>, window_params = [{transform_indices = @transform_0, window_bounds = array<i64: 8, 20>}, {pipeline_mode = #tpu.pipeline_mode<synchronous>, transform_indices = @transform_1, window_bounds = array<i64: 20, 10>}, {pipeline_mode = #tpu.pipeline_mode<synchronous>, transform_indices = @transform_2, window_bounds = array<i64: 1, 10>}, {pipeline_mode = #tpu.pipeline_mode<synchronous>, transform_indices = @transform_3, window_bounds = array<i64: 10, 5>}, {pipeline_mode = #tpu.pipeline_mode<synchronous>, transform_indices = @transform_4, window_bounds = array<i64: 1, 5>}, {transform_indices = @transform_5, window_bounds = array<i64: 8, 5>}]} {
    %c0 = arith.constant 0 : index
    %c0_0 = arith.constant 0 : index
    %0 = vector.load %arg1[%c0, %c0_0] : memref<8x20xf32, #tpu.memory_space<vmem>>, vector<8x20xf32>
    %c0_1 = arith.constant 0 : index
    %c0_2 = arith.constant 0 : index
    %1 = vector.load %arg2[%c0_1, %c0_2] : memref<20x10xf32, #tpu.memory_space<vmem>>, vector<20x10xf32>
    %cst = arith.constant dense<0.000000e+00> : vector<8x10xf32>
    %2 = tpu.matmul %0, %1, %cst {dimension_numbers = #tpu.dot_dimension_numbers<[1], [0], [0], [1], [0, 0, 1, 1], [], []>} : vector<8x20xf32>, vector<20x10xf32>, vector<8x10xf32> -> vector<8x10xf32>
    %c0_3 = arith.constant 0 : index
    %c0_4 = arith.constant 0 : index
    %3 = vector.load %arg3[%c0_3, %c0_4] : memref<1x10xf32, #tpu.memory_space<vmem>>, vector<1x10xf32>
    %4 = vector.broadcast %3 : vector<1x10xf32> to vector<8x10xf32>
    %5 = arith.addf %2, %4 : vector<8x10xf32>
    %cst_5 = arith.constant 0.000000e+00 : f32
    %6 = vector.broadcast %cst_5 : f32 to vector<8x10xf32>
    %7 = arith.maximumf %5, %6 : vector<8x10xf32>
    %c0_6 = arith.constant 0 : index
    %c0_7 = arith.constant 0 : index
    %8 = vector.load %arg4[%c0_6, %c0_7] : memref<10x5xf32, #tpu.memory_space<vmem>>, vector<10x5xf32>
    %cst_8 = arith.constant dense<0.000000e+00> : vector<8x5xf32>
    %9 = tpu.matmul %7, %8, %cst_8 {dimension_numbers = #tpu.dot_dimension_numbers<[1], [0], [0], [1], [0, 0, 1, 1], [], []>} : vector<8x10xf32>, vector<10x5xf32>, vector<8x5xf32> -> vector<8x5xf32>
    %c0_9 = arith.constant 0 : index
    %c0_10 = arith.constant 0 : index
    %10 = vector.load %arg5[%c0_9, %c0_10] : memref<1x5xf32, #tpu.memory_space<vmem>>, vector<1x5xf32>
    %11 = vector.broadcast %10 : vector<1x5xf32> to vector<8x5xf32>
    %12 = arith.addf %9, %11 : vector<8x5xf32>
    %cst_11 = arith.constant dense<0xFF800000> : vector<8xf32>
    %13 = vector.multi_reduction <maximumf>, %12, %cst_11 [1] : vector<8x5xf32> to vector<8xf32>
    %14 = vector.shape_cast %13 : vector<8xf32> to vector<8x1xf32>
    %15 = vector.broadcast %14 : vector<8x1xf32> to vector<8x5xf32>
    %16 = arith.subf %12, %15 : vector<8x5xf32>
    %17 = math.exp %16 : vector<8x5xf32>
    %cst_12 = arith.constant dense<0.000000e+00> : vector<8xf32>
    %18 = vector.multi_reduction <add>, %17, %cst_12 [1] : vector<8x5xf32> to vector<8xf32>
    %19 = vector.shape_cast %18 : vector<8xf32> to vector<8x1xf32>
    %20 = math.log %19 : vector<8x1xf32>
    %21 = vector.broadcast %20 : vector<8x1xf32> to vector<8x5xf32>
    %22 = arith.subf %16, %21 : vector<8x5xf32>
    %c0_13 = arith.constant 0 : index
    %c0_14 = arith.constant 0 : index
    %23 = vector.load %arg6[%c0_13, %c0_14] : memref<8x5xf32, #tpu.memory_space<vmem>>, vector<8x5xf32>
    tpu.vector_store %arg6[%c0_13, %c0_14], %22 {strides = array<i32>} : memref<8x5xf32, #tpu.memory_space<vmem>>, vector<8x5xf32>,
    return
  }
  func.func @transform_0(%arg0: i32) -> (i32, i32) {
    %c0_i32 = arith.constant 0 : i32
    %c0_i32_0 = arith.constant 0 : i32
    return %arg0, %c0_i32 : i32, i32
  }
  func.func @transform_1(%arg0: i32) -> (i32, i32) {
    %c0_i32 = arith.constant 0 : i32
    %c0_i32_0 = arith.constant 0 : i32
    %c0_i32_1 = arith.constant 0 : i32
    return %c0_i32, %c0_i32_0 : i32, i32
  }
  func.func @transform_2(%arg0: i32) -> (i32, i32) {
    %c0_i32 = arith.constant 0 : i32
    %c0_i32_0 = arith.constant 0 : i32
    %c0_i32_1 = arith.constant 0 : i32
    return %c0_i32, %c0_i32_0 : i32, i32
  }
  func.func @transform_3(%arg0: i32) -> (i32, i32) {
    %c0_i32 = arith.constant 0 : i32
    %c0_i32_0 = arith.constant 0 : i32
    %c0_i32_1 = arith.constant 0 : i32
    return %c0_i32, %c0_i32_0 : i32, i32
  }
  func.func @transform_4(%arg0: i32) -> (i32, i32) {
    %c0_i32 = arith.constant 0 : i32
    %c0_i32_0 = arith.constant 0 : i32
    %c0_i32_1 = arith.constant 0 : i32
    return %c0_i32, %c0_i32_0 : i32, i32
  }
  func.func @transform_5(%arg0: i32) -> (i32, i32) {
    %c0_i32 = arith.constant 0 : i32
    %c0_i32_0 = arith.constant 0 : i32
    return %arg0, %c0_i32 : i32, i32
  }
}

</mosaic_0001>

<llo_original>
// kernel: tpu_custom_call.1
$region0: #{tpu_custom_call.1}
  #allocation0 [shape = 'u32[]', space=smem, size = 0x4, offset = 0x4, fixed_abs, tag = 'smem constant byte address 0x4 - core index']
  #allocation1 [shape = 'u32[72,128]{1,0:T(1,128)}', space=vmem, size = 0x9000, scoped, tag = 'internal scratch']
  %s0 = inlined_call_operand.vmem [shape: f32[8,20], index: 0, kind: input, shape index: {}]
  %s1 = inlined_call_operand.vmem [shape: f32[20,10], index: 1, kind: input, shape index: {}]
  %s2 = inlined_call_operand.vmem [shape: f32[1,10], index: 2, kind: input, shape index: {}]
  %s3 = inlined_call_operand.vmem [shape: f32[10,5], index: 3, kind: input, shape index: {}]
  %s4 = inlined_call_operand.vmem [shape: f32[1,5], index: 4, kind: input, shape index: {}]
  %s5 = inlined_call_operand.hbm [shape: f32[8,5], index: 5, kind: output, shape index: {}]
  %s6 = sld [smem:[#allocation0]]
  $region30: #{tpu_custom_call.1} parent=0
    _
  %s8 = ssub.s32 1, %s6
  %s9 = scalar_select 0, %s8, %s6
  $region1: #{tpu_custom_call.1} parent=0
    #allocation2 [shape = 'u8[4096]{0}', space=vmem, size = 0x1000, scoped, tag = 'output window, operand 0, single buffered']
    #allocation3 [shape = 's32[1]{0}', space=sflag, size = 0x4, scoped, tag = 'scoped memory for tpu_custom_call.1']
    %10 = vsyncpa [#allocation3], 0
    // Predicated region
    $region2: #{tpu_custom_call.1} parent=1 // pred_check
      _
    $region3: #{tpu_custom_call.1} parent=1 // pred_check_branch
      %12 = sbr.rel (0) target = $region5
    $region4: #{tpu_custom_call.1} parent=1 // pred_region
      _
    $region5: #{tpu_custom_call.1} parent=1 // pred_fallthru
      _
    // Predicated region
    $region6: #{tpu_custom_call.1} parent=1 // pred_check
      _
    $region7: #{tpu_custom_call.1} parent=1 // pred_check_branch
      %14 = sbr.rel (0) target = $region9
    $region8: #{tpu_custom_call.1} parent=1 // pred_region
      _
    $region9: #{tpu_custom_call.1} parent=1 // pred_fallthru
      _
    // Predicated region
    $region10: #{tpu_custom_call.1} parent=1 // pred_check
      _
    $region11: #{tpu_custom_call.1} parent=1 // pred_check_branch
      %16 = sbr.rel (0) target = $region13
    $region12: #{tpu_custom_call.1} parent=1 // pred_region
      _
    $region13: #{tpu_custom_call.1} parent=1 // pred_fallthru
      _
    // Predicated region
    $region14: #{tpu_custom_call.1} parent=1 // pred_check
      _
    $region15: #{tpu_custom_call.1} parent=1 // pred_check_branch
      %18 = sbr.rel (0) target = $region17
    $region16: #{tpu_custom_call.1} parent=1 // pred_region
      _
    $region17: #{tpu_custom_call.1} parent=1 // pred_fallthru
      _
    // Predicated region
    $region18: #{tpu_custom_call.1} parent=1 // pred_check
      _
    $region19: #{tpu_custom_call.1} parent=1 // pred_check_branch
      %20 = sbr.rel (0) target = $region21
    $region20: #{tpu_custom_call.1} parent=1 // pred_region
      _
    $region21: #{tpu_custom_call.1} parent=1 // pred_fallthru
      _
    %v21 = vld [vmem:[%s0] sm:$0xff]
    %v22 = vld [vmem:[%s1] sm:$0xff]
    %v23 = vld [vmem:[%s1 + $0x8] sm:$0xff]
    %v24 = vld [vmem:[%s1 + $0x10] sm:$0xf]
    %v25 = vld [vmem:[%s2] sm:$0x1]
    %v27 = vperm.slane %v25, 0
    %vm29 = vcmask 162816
    %v31 = vsel %vm29, %v21, 0
    %vm33 = vcmask 1043456
    %v35 = vsel %vm33, %v24, 0
    %37 = vmatpush.msra.mxu0 0.0
    %38 = vmatpush.msra.mxu0 0.0
    %39 = vmatpush.msra.mxu0 0.0
    %40 = vmatpush.msra.mxu0 0.0
    %41 = vmatpush.msra.mxu0 0.0
    %42 = vmatpush.msra.mxu0 0.0
    %43 = vmatpush.msra.mxu0 0.0
    %44 = vmatpush.msra.mxu0 0.0
    %45 = vmatpush.msra.mxu0 0.0
    %46 = vmatpush.msra.mxu0 0.0
    %47 = vmatpush.msra.mxu0 0.0
    %48 = vmatpush.msra.mxu0 0.0
    %49 = vmatpush.msra.mxu0 0.0
    %50 = vmatpush.msra.mxu0 %v35
    %51 = vmatpush.msra.mxu0 %v23
    %52 = vmatpush.msra.mxu0 %v22
    %53 = vmatmul.f32.gmra.mxu0 %v31
    %v54 = vpop.f32.mrf.mxu0
    %v55 = vadd.f32 %v27, %v54
    %56 = vdwg.mxu0
    %v57 = vmax.f32 %v55, 0.0
    %v58 = vld [vmem:[%s3] sm:$0xff]
    %v59 = vld [vmem:[%s3 + $0x8] sm:$0x3]
    %v60 = vld [vmem:[%s4] sm:$0x1]
    %v62 = vperm.slane %v60, 0
    %vm64 = vcmask 80896
    %v66 = vsel %vm64, %v57, 0
    %vm68 = vcmask 1041408
    %v70 = vsel %vm68, %v59, 0
    %72 = vmatpush.msra.mxu0 0.0
    %73 = vmatpush.msra.mxu0 0.0
    %74 = vmatpush.msra.mxu0 0.0
    %75 = vmatpush.msra.mxu0 0.0
    %76 = vmatpush.msra.mxu0 0.0
    %77 = vmatpush.msra.mxu0 0.0
    %78 = vmatpush.msra.mxu0 0.0
    %79 = vmatpush.msra.mxu0 0.0
    %80 = vmatpush.msra.mxu0 0.0
    %81 = vmatpush.msra.mxu0 0.0
    %82 = vmatpush.msra.mxu0 0.0
    %83 = vmatpush.msra.mxu0 0.0
    %84 = vmatpush.msra.mxu0 0.0
    %85 = vmatpush.msra.mxu0 0.0
    %86 = vmatpush.msra.mxu0 %v70
    %87 = vmatpush.msra.mxu0 %v58
    %88 = vmatmul.f32.gmra.mxu0 %v66
    %v89 = vpop.f32.mrf.mxu0
    %v90 = vadd.f32 %v62, %v89
    %91 = vdwg.mxu0
    %vm92 = vcmask 39936
    %v93 = vsel %vm92, %v90, -inf
    %94 = vmax.xlane.f32.xlu0 %v93
    %v95 = vpop.xlane.xlu0 %94
    %v96 = vsub.f32 %v90, %v95
    %v97 = vmul.f32 %v96, 1.442695
    %v98 = vpow.pop %v97
    %v99 = vsel %vm92, %v98, 0.0
    %100 = vadd.xlane.f32.xlu0 %v99
    %v101 = vpop.xlane.xlu0 %100
    %v102 = vlog2.pop %v101
    %v103 = vmul.f32 %v102, 0.6931472
    %v104 = vsub.f32 %v96, %v103
    %105 = vst.msk [vmem:[#allocation2] sm:$0xff] %vm92, %v104
    // Predicated region
    $region22: #{tpu_custom_call.1} parent=1 // pred_check
      _
    $region23: #{tpu_custom_call.1} parent=1 // pred_check_branch
      %107 = sbr.rel (0) target = $region25
    $region24: #{tpu_custom_call.1} parent=1 // pred_region
      %109 = vsyncadd [#allocation3], 0
      %s111 = sshll.u32 [#allocation2], 4
      %s112 = int_to_ptr.vmem [resolvable:$true] %s111
      %s113 = sshll.u32 %s5, 4
      %s114 = int_to_ptr.hbm [resolvable:$true] %s113
      %116 = dma.vmem_to_hbm [thread:$0]  %s112, 128, %s114, [#allocation3]
    $region25: #{tpu_custom_call.1} parent=1 // pred_fallthru
      _
    // Predicated region
    $region26: #{tpu_custom_call.1} parent=1 // pred_check
      _
    $region27: #{tpu_custom_call.1} parent=1 // pred_check_branch
      %118 = sbr.rel (0) target = $region29
    $region28: #{tpu_custom_call.1} parent=1 // pred_region
      %120 = dma.done [#allocation3], 128
    $region29: #{tpu_custom_call.1} parent=1 // pred_fallthru
      _
    %121 = vsyncpa [#allocation3], 1

</llo_original>
